<compile_context>
chip_gen: v7x
topology: tpu7x:2x2x1
jax: 0.10.0
libtpu: 0.0.40
codegen_flags: <defaults>
</compile_context>

<pallas_src>
import functools

import numpy as np

import jax
import jax.numpy as jnp
from jax.experimental import pallas as pl
from jax.experimental.pallas import tpu as pltpu


def _round_up(n, m):
    return (n + m - 1) // m * m


def _vmem_capacity_bytes():
    try:
        info = pltpu.get_tpu_info()
        cap = getattr(info, "vmem_capacity_bytes", None)
        if cap:
            return int(cap)
    except Exception:
        pass
    return 64 * 1024 * 1024  # v7x-safe fallback


def _tile_footprint_bytes(TH, W, C, Cp, G, Gp):
    """Approximate per-step live VMEM for the main kernel at row-tile TH."""
    THW = TH * W
    by = 0
    by += 2 * C * THW * 4              # x centre tile (double-buffered)
    by += 2 * C * 2 * W * 4            # halo rows (double-buffered)
    by += 2 * (3 * Gp) * (3 * Cp) * 4  # conv weight
    by += 2 * C * 4                    # SE gate
    by += 2 * (C + G) * THW * 4        # output tile (double-buffered)
    by += 3 * Cp * THW * 4             # patch scratch
    by += (6 * Gp + 3 * C) * THW * 4   # matmul result + shifted terms + up/down temps
    return by


def _pick_tile_rows(H, W, C, Cp, G, Gp, budget_bytes):
    """Largest row tile dividing H with (TH*W) % 128 == 0 that fits the VMEM budget."""
    cands = [th for th in range(1, H + 1) if H % th == 0 and (th * W) % 128 == 0]
    if not cands:
        return H  # full-height tile (block == full dim, lane-masked stores)
    for th in sorted(cands, reverse=True):
        if _tile_footprint_bytes(th, W, C, Cp, G, Gp) <= budget_bytes:
            return th
    return min(cands)


# -----------------------------------------------------------------------------
# pass 1: SE squeeze -> per-(batch, channel) sigmoid gate s, shape (B, C, 1)
# -----------------------------------------------------------------------------
def _se_squeeze_kernel(x_ref, w1t_ref, b1_ref, w2_ref, b2_ref, scale_ref,
                       acc_ref, *, inv_hw):
    # x_ref: (1, C, THW) spatial tile (channels on sublanes, HW on lanes)
    # acc_ref: (C, 1) VMEM scratch accumulating channel sums across the NT axis.
    # NOTE: the NT grid axis must stay innermost and "arbitrary" for this accumulator.
    t = pl.program_id(1)

    @pl.when(t == 0)
    def _():
        acc_ref[...] = jnp.zeros_like(acc_ref)

    acc_ref[...] += jnp.sum(x_ref[0], axis=1, keepdims=True)                 # (C, 1)

    @pl.when(t == pl.num_programs(1) - 1)
    def _():
        y = acc_ref[...] * inv_hw                                            # GAP
        h = jnp.sum(w1t_ref[...] * y, axis=0, keepdims=True) + b1_ref[...]   # (1, R)
        h = jnp.maximum(h, 0.0)
        s = jnp.sum(w2_ref[...] * h, axis=1, keepdims=True) + b2_ref[...]    # (C, 1)
        scale_ref[0] = jax.nn.sigmoid(s)


# -----------------------------------------------------------------------------
# pass 2: fused 3x3 conv + ReLU, SE excite of x, channel concat
# -----------------------------------------------------------------------------
def _conv_se_kernel(halo_ref, x_ref, w3_ref, s_ref, out_ref, pat_ref,
                    *, C, Cp, G, Gp, W, TH):
    # halo_ref: (1, 1, C, 2W)  x rows (t*TH - 1) and (t*TH + TH) (zeros at image edge)
    # x_ref:    (1, C, TH*W)   centre rows, streamed straight from x (no HBM copy)
    # w3_ref:   (3Gp, 3Cp)     conv weight, row dj*Gp + g, col di*Cp + c, zero padded
    # s_ref:    (1, C, 1)      SE gate for this batch element
    # out_ref:  (1, C+G, TH*W) [:C] = s*x, [C:] = relu(conv3x3(x))
    # pat_ref:  (3Cp, TH*W)    VMEM scratch holding the three row-shifted bases
    THW = TH * W
    center = x_ref[0]                                     # (C, THW) == x[r]
    halo = halo_ref[0, 0]                                 # (C, 2W)

    # Channel-padding rows are contracted against zero weight columns, but they must
    # hold finite values (uninitialised VMEM could be NaN) -> zero them explicitly.
    if Cp != C:
        zpad = jnp.zeros((Cp - C, THW), jnp.float32)
        for blk in range(3):
            pat_ref[blk * Cp + C:(blk + 1) * Cp, :] = zpad

    # Row-shifted bases (di = 0, 1, 2  <->  x[r-1], x[r], x[r+1]); the rows crossing
    # the tile boundary come from the two halo rows.
    if THW > W:
        up = jnp.concatenate([halo[:, :W], center[:, :THW - W]], axis=1)
        down = jnp.concatenate([center[:, W:], halo[:, W:]], axis=1)
    else:  # TH == 1
        up = halo[:, :W]
        down = halo[:, W:]
    pat_ref[0:C, :] = up
    pat_ref[Cp:Cp + C, :] = center
    pat_ref[2 * Cp:2 * Cp + C, :] = down

    # One MXU pass over all 3 row taps and all 3 column taps:
    #   m3[dj*Gp + g, p] = sum_{di, c} w[g, c, di, dj] * x[r + di - 1, j]
    m3 = jnp.dot(w3_ref[...], pat_ref[...], preferred_element_type=jnp.float32)
    m_left, m_mid, m_right = m3[0:Gp], m3[Gp:2 * Gp], m3[2 * Gp:3 * Gp]

    # Fold the dc = -1 / +1 column taps in after the matmul: shift the partial sums
    # by one lane and zero the wrapped column (the conv's W-direction zero padding).
    col = jax.lax.broadcasted_iota(jnp.int32, (1, THW), 1) % W
    not_first = jnp.where(col != 0, 1.0, 0.0)             # j == 0     -> 0
    not_last = jnp.where(col != W - 1, 1.0, 0.0)          # j == W - 1 -> 0
    conv = (jnp.roll(m_left, 1, axis=1) * not_first
            + m_mid
            + jnp.roll(m_right, -1, axis=1) * not_last)
    conv = jnp.maximum(conv, 0.0)                         # (Gp, THW)

    # SE excitation of x and channel concat: two direct, lane-dense stores.
    out_ref[0, :C] = (center * s_ref[0]).astype(out_ref.dtype)
    out_ref[0, C:] = conv[:G].astype(out_ref.dtype)


# -----------------------------------------------------------------------------
# wrapper
# -----------------------------------------------------------------------------
def make_se_dense_forward(x, conv_w, fc1_w, fc1_b, fc2_w, fc2_b, *, tile_rows=None):
    """Forward pass of make_se_dense, torch-layout parameters.

    x      : (B, C, H, W) f32
    conv_w : (G, C, 3, 3) f32   (nn.Conv2d weight, no bias)
    fc1_w  : (R, C), fc1_b : (R,)     (R = C // reduction)
    fc2_w  : (C, R), fc2_b : (C,)
    returns (B, C+G, H, W) with [:, :C] = SE(x) and [:, C:] = relu(conv3x3(x))
    """
    B, C, H, W = x.shape
    G = conv_w.shape[0]
    R = fc1_w.shape[0]
    HW = H * W
    Cp = _round_up(C, 8)
    Gp = _round_up(G, 8)

    vmem_limit = min(int(_vmem_capacity_bytes() * 0.75), 100 * 1024 * 1024)
    TH = (_pick_tile_rows(H, W, C, Cp, G, Gp, budget_bytes=vmem_limit // 2)
          if tile_rows is None else int(tile_rows))
    assert H % TH == 0, (H, TH)
    # lane-dense (128-aligned) spatial blocks -> unmasked vector stores
    assert (TH * W) % 128 == 0 or TH == H, (TH, W)
    NT = H // TH
    THW = TH * W

    x = x.astype(jnp.float32)
    x_flat = x.reshape(B, C, HW)

    # SE MLP params in kernel layout
    w1t = jnp.transpose(fc1_w).astype(jnp.float32)        # (C, R)
    b1 = fc1_b.reshape(1, R).astype(jnp.float32)
    w2 = fc2_w.astype(jnp.float32)                        # (C, R)
    b2 = fc2_b.reshape(C, 1).astype(jnp.float32)

    # ---- pass 1: SE squeeze -> gate (B, C, 1) --------------------------------
    squeeze = functools.partial(_se_squeeze_kernel, inv_hw=1.0 / HW)
    scale = pl.pallas_call(
        squeeze,
        out_shape=jax.ShapeDtypeStruct((B, C, 1), jnp.float32),
        grid_spec=pltpu.PrefetchScalarGridSpec(
            num_scalar_prefetch=0,
            grid=(B, NT),   # NT innermost + "arbitrary": cross-tile accumulator
            in_specs=[
                pl.BlockSpec((1, C, THW), lambda b, t: (b, 0, t)),
                pl.BlockSpec((C, R), lambda b, t: (0, 0)),
                pl.BlockSpec((1, R), lambda b, t: (0, 0)),
                pl.BlockSpec((C, R), lambda b, t: (0, 0)),
                pl.BlockSpec((C, 1), lambda b, t: (0, 0)),
            ],
            out_specs=pl.BlockSpec((1, C, 1), lambda b, t: (b, 0, 0)),
            scratch_shapes=[pltpu.VMEM((C, 1), jnp.float32)],
        ),
        compiler_params=pltpu.CompilerParams(
            dimension_semantics=("parallel", "arbitrary"),
            vmem_limit_bytes=vmem_limit),
    )(x_flat, w1t, b1, w2, b2)

    # ---- halo rows: only 2 rows per row-tile are duplicated; x itself is read
    #      in place by the main kernel (no padded / im2col copy of x in HBM). ----
    if NT > 1:
        zrow = jnp.zeros((B, C, 1, W), jnp.float32)
        top = jnp.concatenate([zrow, x[:, :, TH - 1::TH, :][:, :, :NT - 1, :]], axis=2)
        bot = jnp.concatenate([x[:, :, TH::TH, :], zrow], axis=2)
    else:
        top = jnp.zeros((B, C, 1, W), jnp.float32)
        bot = jnp.zeros((B, C, 1, W), jnp.float32)
    halos = jnp.transpose(jnp.concatenate([top, bot], axis=3), (0, 2, 1, 3))  # (B, NT, C, 2W)

    # ---- conv weight in (3Gp, 3Cp) layout: row dj*Gp + g, col di*Cp + c --------
    w3 = jnp.transpose(conv_w.astype(jnp.float32), (3, 0, 2, 1))   # (dj, g, di, c)
    w3 = jnp.pad(w3, ((0, 0), (0, Gp - G), (0, 0), (0, Cp - C)))
    w3 = w3.reshape(3 * Gp, 3 * Cp)

    # ---- pass 2: fused conv + ReLU, SE excite, channel concat -----------------
    kernel = functools.partial(_conv_se_kernel, C=C, Cp=Cp, G=G, Gp=Gp, W=W, TH=TH)
    flops = 2 * B * HW * (3 * Cp) * (3 * Gp) + 10 * B * HW * (C + G)
    bytes_accessed = 4 * (x_flat.size + halos.size + w3.size + scale.size
                          + B * (C + G) * HW)

    out_flat = pl.pallas_call(
        kernel,
        out_shape=jax.ShapeDtypeStruct((B, C + G, HW), jnp.float32),
        grid_spec=pltpu.PrefetchScalarGridSpec(
            num_scalar_prefetch=0,
            grid=(B, NT),   # both axes parallel; on v7x keep B*NT even if possible
            in_specs=[
                pl.BlockSpec((1, 1, C, 2 * W), lambda b, t: (b, t, 0, 0)),
                pl.BlockSpec((1, C, THW), lambda b, t: (b, 0, t)),
                pl.BlockSpec((3 * Gp, 3 * Cp), lambda b, t: (0, 0)),
                pl.BlockSpec((1, C, 1), lambda b, t: (b, 0, 0)),
            ],
            out_specs=pl.BlockSpec((1, C + G, THW), lambda b, t: (b, 0, t)),
            scratch_shapes=[pltpu.VMEM((3 * Cp, THW), jnp.float32)],
        ),
        compiler_params=pltpu.CompilerParams(
            dimension_semantics=("parallel", "parallel"),
            vmem_limit_bytes=vmem_limit),
        cost_estimate=pl.CostEstimate(
            flops=flops, transcendentals=0, bytes_accessed=bytes_accessed),
    )(halos, x_flat, w3, scale)

    return out_flat.reshape(B, C + G, H, W)


if __name__ == "__main__":
    B, C, H, W = 2, 4, 16, 16      # nChannels = 4
    G = 8                          # growthRate = 8
    R = C // 2                     # SE reduction = 2

    key = jax.random.PRNGKey(0)
    kx, kc, k1, kb1, k2, kb2 = jax.random.split(key, 6)

    # x and the conv weight are rounded to bf16-representable values so the conv path
    # is reproducible against a float64 reference to ~1e-6 regardless of whether the
    # f32 MXU matmul is lowered as a single bf16 pass -> allows tight tolerances.
    x = jax.random.normal(kx, (B, C, H, W), jnp.float32)
    x = x.astype(jnp.bfloat16).astype(jnp.float32)
    conv_w = 0.2 * jax.random.normal(kc, (G, C, 3, 3), jnp.float32)
    conv_w = conv_w.astype(jnp.bfloat16).astype(jnp.float32)
    fc1_w = 0.3 * jax.random.normal(k1, (R, C), jnp.float32)
    fc1_b = 0.3 * jax.random.normal(kb1, (R,), jnp.float32)
    fc2_w = 0.3 * jax.random.normal(k2, (C, R), jnp.float32)
    fc2_b = 0.3 * jax.random.normal(kb2, (C,), jnp.float32)

    # ---- float64 numpy reference ---------------------------------------------
    xn = np.asarray(x, np.float64)
    wcn = np.asarray(conv_w, np.float64)
    w1n = np.asarray(fc1_w, np.float64)
    b1n = np.asarray(fc1_b, np.float64)
    w2n = np.asarray(fc2_w, np.float64)
    b2n = np.asarray(fc2_b, np.float64)

    xp = np.pad(xn, ((0, 0), (0, 0), (1, 1), (1, 1)))
    conv_ref = np.zeros((B, G, H, W))
    for di in range(3):
        for dj in range(3):
            conv_ref += np.einsum('gc,bchw->bghw', wcn[:, :, di, dj],
                                  xp[:, :, di:di + H, dj:dj + W])
    conv_ref = np.maximum(conv_ref, 0.0)
    y = xn.mean(axis=(2, 3))                                   # (B, C)
    h = np.maximum(y @ w1n.T + b1n, 0.0)                       # (B, R)
    s = 1.0 / (1.0 + np.exp(-(h @ w2n.T + b2n)))               # (B, C)
    ref = np.concatenate([xn * s[:, :, None, None], conv_ref], axis=1)

    # run once with the auto tile (single tile) and once with 2 row-tiles (halo path)
    for tr in (None, 8):
        out = make_se_dense_forward(x, conv_w, fc1_w, fc1_b, fc2_w, fc2_b,
                                    tile_rows=tr)
        out = jax.block_until_ready(out)
        assert out.shape == (B, C + G, H, W), out.shape
        np.testing.assert_allclose(np.asarray(out), ref, rtol=1e-4, atol=1e-4)

    print("KERNEL_OK")
</pallas_src>

<mosaic_0001>
module attributes {stable_mosaic.version = 11 : i64} {
  func.func @_se_squeeze_kernel(%arg0: i32, %arg1: i32, %arg2: memref<1x4x256xf32, #tpu.memory_space<vmem>>, %arg3: memref<4x2xf32, #tpu.memory_space<vmem>>, %arg4: memref<1x2xf32, #tpu.memory_space<vmem>>, %arg5: memref<4x2xf32, #tpu.memory_space<vmem>>, %arg6: memref<4x1xf32, #tpu.memory_space<vmem>>, %arg7: memref<1x4x1xf32, #tpu.memory_space<vmem>>, %arg8: memref<4x1xf32, #tpu.memory_space<vmem>>) attributes {dimension_semantics = [#tpu.dimension_semantics<parallel>, #tpu.dimension_semantics<arbitrary>], iteration_bounds = array<i64: 2, 1>, scalar_prefetch = 0 : i64, scratch_operands = 1 : i64, tpu.core_type = #tpu.core_type<tc>, window_params = [{transform_indices = @transform_0, window_bounds = array<i64: 1, 4, 256>}, {pipeline_mode = #tpu.pipeline_mode<synchronous>, transform_indices = @transform_1, window_bounds = array<i64: 4, 2>}, {pipeline_mode = #tpu.pipeline_mode<synchronous>, transform_indices = @transform_2, window_bounds = array<i64: 1, 2>}, {pipeline_mode = #tpu.pipeline_mode<synchronous>, transform_indices = @transform_3, window_bounds = array<i64: 4, 2>}, {pipeline_mode = #tpu.pipeline_mode<synchronous>, transform_indices = @transform_4, window_bounds = array<i64: 4, 1>}, {transform_indices = @transform_5, window_bounds = array<i64: 1, 4, 1>}]} {
    %c0_i32 = arith.constant 0 : i32
    %0 = arith.cmpi eq, %arg1, %c0_i32 : i32
    %1 = arith.extui %0 : i1 to i32
    %c0_i32_0 = arith.constant 0 : i32
    %2 = arith.cmpi ne, %1, %c0_i32_0 : i32
    scf.if %2 {
      %cst_9 = arith.constant 0.000000e+00 : f32
      %13 = vector.broadcast %cst_9 : f32 to vector<4x1xf32>
      %c0_10 = arith.constant 0 : index
      %c0_11 = arith.constant 0 : index
      %14 = vector.load %arg8[%c0_10, %c0_11] : memref<4x1xf32, #tpu.memory_space<vmem>>, vector<4x1xf32>
      tpu.vector_store %arg8[%c0_10, %c0_11], %13 {strides = array<i32>} : memref<4x1xf32, #tpu.memory_space<vmem>>, vector<4x1xf32>,
    } else {
    }
    %c0 = arith.constant 0 : index
    %c0_1 = arith.constant 0 : index
    %3 = vector.load %arg8[%c0, %c0_1] : memref<4x1xf32, #tpu.memory_space<vmem>>, vector<4x1xf32>
    %c0_2 = arith.constant 0 : index
    %c0_3 = arith.constant 0 : index
    %c0_4 = arith.constant 0 : index
    %4 = vector.load %arg2[%c0_2, %c0_3, %c0_4] : memref<1x4x256xf32, #tpu.memory_space<vmem>>, vector<1x4x256xf32>
    %5 = vector.shape_cast %4 : vector<1x4x256xf32> to vector<4x256xf32>
    %cst = arith.constant dense<0.000000e+00> : vector<4xf32>
    %6 = vector.multi_reduction <add>, %5, %cst [1] : vector<4x256xf32> to vector<4xf32>
    %7 = vector.shape_cast %6 : vector<4xf32> to vector<4x1xf32>
    %8 = arith.addf %3, %7 : vector<4x1xf32>
    %c0_5 = arith.constant 0 : index
    %c0_6 = arith.constant 0 : index
    %9 = vector.load %arg8[%c0_5, %c0_6] : memref<4x1xf32, #tpu.memory_space<vmem>>, vector<4x1xf32>
    tpu.vector_store %arg8[%c0_5, %c0_6], %8 {strides = array<i32>} : memref<4x1xf32, #tpu.memory_space<vmem>>, vector<4x1xf32>,
    %c0_i32_7 = arith.constant 0 : i32
    %10 = arith.cmpi eq, %arg1, %c0_i32_7 : i32
    %11 = arith.extui %10 : i1 to i32
    %c0_i32_8 = arith.constant 0 : i32
    %12 = arith.cmpi ne, %11, %c0_i32_8 : i32
    scf.if %12 {
      %c0_9 = arith.constant 0 : index
      %c0_10 = arith.constant 0 : index
      %13 = vector.load %arg8[%c0_9, %c0_10] : memref<4x1xf32, #tpu.memory_space<vmem>>, vector<4x1xf32>
      %cst_11 = arith.constant 3.906250e-03 : f32
      %14 = vector.broadcast %cst_11 : f32 to vector<4x1xf32>
      %15 = arith.mulf %13, %14 : vector<4x1xf32>
      %c0_12 = arith.constant 0 : index
      %c0_13 = arith.constant 0 : index
      %16 = vector.load %arg3[%c0_12, %c0_13] : memref<4x2xf32, #tpu.memory_space<vmem>>, vector<4x2xf32>
      %17 = vector.broadcast %15 : vector<4x1xf32> to vector<4x2xf32>
      %18 = arith.mulf %16, %17 : vector<4x2xf32>
      %cst_14 = arith.constant dense<0.000000e+00> : vector<2xf32>
      %19 = vector.multi_reduction <add>, %18, %cst_14 [0] : vector<4x2xf32> to vector<2xf32>
      %20 = vector.shape_cast %19 : vector<2xf32> to vector<1x2xf32>
      %c0_15 = arith.constant 0 : index
      %c0_16 = arith.constant 0 : index
      %21 = vector.load %arg4[%c0_15, %c0_16] : memref<1x2xf32, #tpu.memory_space<vmem>>, vector<1x2xf32>
      %22 = arith.addf %20, %21 : vector<1x2xf32>
      %cst_17 = arith.constant 0.000000e+00 : f32
      %23 = vector.broadcast %cst_17 : f32 to vector<1x2xf32>
      %24 = arith.maximumf %22, %23 : vector<1x2xf32>
      %c0_18 = arith.constant 0 : index
      %c0_19 = arith.constant 0 : index
      %25 = vector.load %arg5[%c0_18, %c0_19] : memref<4x2xf32, #tpu.memory_space<vmem>>, vector<4x2xf32>
      %26 = vector.broadcast %24 : vector<1x2xf32> to vector<4x2xf32>
      %27 = arith.mulf %25, %26 : vector<4x2xf32>
      %cst_20 = arith.constant dense<0.000000e+00> : vector<4xf32>
      %28 = vector.multi_reduction <add>, %27, %cst_20 [1] : vector<4x2xf32> to vector<4xf32>
      %29 = vector.shape_cast %28 : vector<4xf32> to vector<4x1xf32>
      %c0_21 = arith.constant 0 : index
      %c0_22 = arith.constant 0 : index
      %30 = vector.load %arg6[%c0_21, %c0_22] : memref<4x1xf32, #tpu.memory_space<vmem>>, vector<4x1xf32>
      %31 = arith.addf %29, %30 : vector<4x1xf32>
      %32 = arith.negf %31 : vector<4x1xf32>
      %33 = math.exp %32 : vector<4x1xf32>
      %cst_23 = arith.constant 1.000000e+00 : f32
      %34 = vector.broadcast %cst_23 : f32 to vector<4x1xf32>
      %35 = arith.addf %34, %33 : vector<4x1xf32>
      %36 = arith.divf %34, %35 : vector<4x1xf32>
      %c0_24 = arith.constant 0 : index
      %c0_25 = arith.constant 0 : index
      %c0_26 = arith.constant 0 : index
      %37 = vector.load %arg7[%c0_24, %c0_25, %c0_26] : memref<1x4x1xf32, #tpu.memory_space<vmem>>, vector<1x4x1xf32>
      %38 = vector.shape_cast %37 : vector<1x4x1xf32> to vector<4x1xf32>
      %39 = vector.shape_cast %36 : vector<4x1xf32> to vector<1x4x1xf32>
      tpu.vector_store %arg7[%c0_24, %c0_25, %c0_26], %39 {strides = array<i32>} : memref<1x4x1xf32, #tpu.memory_space<vmem>>, vector<1x4x1xf32>,
    } else {
    }
    return
  }
  func.func @transform_0(%arg0: i32, %arg1: i32) -> (i32, i32, i32) {
    %c0_i32 = arith.constant 0 : i32
    %c0_i32_0 = arith.constant 0 : i32
    return %arg0, %c0_i32, %arg1 : i32, i32, i32
  }
  func.func @transform_1(%arg0: i32, %arg1: i32) -> (i32, i32) {
    %c0_i32 = arith.constant 0 : i32
    %c0_i32_0 = arith.constant 0 : i32
    %c0_i32_1 = arith.constant 0 : i32
    return %c0_i32, %c0_i32_0 : i32, i32
  }
  func.func @transform_2(%arg0: i32, %arg1: i32) -> (i32, i32) {
    %c0_i32 = arith.constant 0 : i32
    %c0_i32_0 = arith.constant 0 : i32
    %c0_i32_1 = arith.constant 0 : i32
    return %c0_i32, %c0_i32_0 : i32, i32
  }
  func.func @transform_3(%arg0: i32, %arg1: i32) -> (i32, i32) {
    %c0_i32 = arith.constant 0 : i32
    %c0_i32_0 = arith.constant 0 : i32
    %c0_i32_1 = arith.constant 0 : i32
    return %c0_i32, %c0_i32_0 : i32, i32
  }
  func.func @transform_4(%arg0: i32, %arg1: i32) -> (i32, i32) {
    %c0_i32 = arith.constant 0 : i32
    %c0_i32_0 = arith.constant 0 : i32
    %c0_i32_1 = arith.constant 0 : i32
    return %c0_i32, %c0_i32_0 : i32, i32
  }
  func.func @transform_5(%arg0: i32, %arg1: i32) -> (i32, i32, i32) {
    %c0_i32 = arith.constant 0 : i32
    %c0_i32_0 = arith.constant 0 : i32
    %c0_i32_1 = arith.constant 0 : i32
    return %arg0, %c0_i32, %c0_i32_0 : i32, i32, i32
  }
}

</mosaic_0001>

<llo_original>
// kernel: tpu_custom_call.1
$region0: #{tpu_custom_call.1}
  #allocation0 [shape = 'u32[]', space=smem, size = 0x4, offset = 0x4, fixed_abs, tag = 'smem constant byte address 0x4 - core index']
  #allocation1 [shape = 'u32[144,128]{1,0:T(1,128)}', space=vmem, size = 0x12000, scoped, tag = 'internal scratch']
  #allocation2 [shape = 'f32[4,1]{1,0:T(4,128)}', space=vmem, size = 0x800, scoped, tag = 'scratch operand']
  %s0 = inlined_call_operand.vmem [shape: f32[2,4,256], index: 0, kind: input, shape index: {}]
  %s1 = inlined_call_operand.vmem [shape: f32[4,2], index: 1, kind: input, shape index: {}]
  %s2 = inlined_call_operand.vmem [shape: f32[1,2], index: 2, kind: input, shape index: {}]
  %s3 = inlined_call_operand.vmem [shape: f32[4,2], index: 3, kind: input, shape index: {}]
  %s4 = inlined_call_operand.vmem [shape: f32[4,1], index: 4, kind: input, shape index: {}]
  %s5 = inlined_call_operand.vmem [shape: f32[2,4,1], index: 5, kind: output, shape index: {}]
  %s6 = sld [smem:[#allocation0]]
  $region61: #{tpu_custom_call.1} parent=0
    _
  %s8 = ssub.s32 1, %s6
  %s9 = scalar_select 0, %s8, %s6
  loop: start=0, step=1, limit=4
  $region2: #{tpu_custom_call.1} parent=0 // loop_pre_header
    _
  $region3: #{tpu_custom_call.1} parent=0 // loop_header
    %s11 = sphi 0, %s15
    %p12 = scmp.ge.s32.totalorder %s11, 4
    %s18 = sphi 0, %s30
    %s19 = sphi 0, %s26
    %s20 = sphi 0, %s18
    %s21 = sphi 0, %s19
    %s22 = sphi 0, %s20
    %s23 = sphi 0, %s21
    %s35 = sphi 0, %s37
    %s38 = sphi 0, %s35
    %s39 = sphi 0, %s38
    %s55 = sphi 0, %s39
    %s59 = sphi 0, %s59
    %s61 = sphi 0, %s59
    %s62 = sphi 0, %s61
    %s76 = sphi 0, %s62
    %s80 = sphi 0, %s80
    %s82 = sphi 0, %s80
    %s83 = sphi 0, %s82
    %s97 = sphi 0, %s83
    %s101 = sphi 0, %s101
    %s103 = sphi 0, %s101
    %s104 = sphi 0, %s103
    %s118 = sphi 0, %s104
    %s122 = sphi 0, %s122
    %s124 = sphi 0, %s122
    %s125 = sphi 0, %s124
    %s139 = sphi 0, %s125
    %s145 = sphi 0, %s147
    %s148 = sphi 0, %s145
    %s149 = sphi 0, %s148
    %s165 = sphi 0, %s149
  $region4: #{tpu_custom_call.1} parent=0 // loop_header_branch
    %14 = sbr.rel (%p12) target = $region8
  $region5: #{tpu_custom_call.1} parent=0 // loop_body
    %s16 = ssub.s32 %s11, 1
    %s17 = ssub.s32 %s11, 2
    %s24 = sadd.s32 1, %s19
    %p25 = scmp.ge.s32.totalorder %s24, 1
    %s26 = scalar_select %p25, 0, %s24
    %s27 = sadd.s32 1, %s18
    %s28 = scalar_select %p25, %s27, %s18
    %p29 = scmp.ge.s32.totalorder %s28, 2
    %s30 = scalar_select %p29, 0, %s28
    %s31 = ssub.s32 %s18, %s30
    %s32 = ssub.s32 %s19, %s26
    %s33 = sor.u32 %s31, %s32
    %p34 = scmp.eq.s32.totalorder %s33, 0
    %s36 = sadd.s32 %s35, 1
    %s37 = scalar_select %p34, %s35, %s36
    %p40 = pneg %p34
    %p41 = scmp.eq.s32.totalorder %s11, 1
    %p42 = por %p40, %p41
    %p43 = scmp.ne.s32.totalorder %s35, %s38
    %p44 = scmp.eq.s32.totalorder %s11, 0
    %p45 = por %p43, %p44
    %p46 = scmp.ne.s32.totalorder %s35, %s38
    %p47 = scmp.eq.s32.totalorder %s16, 1
    %p48 = por %p46, %p47
    %p49 = scmp.ne.s32.totalorder %s38, %s39
    %p50 = scmp.eq.s32.totalorder %s16, 0
    %p51 = por %p49, %p50
    %p52 = scmp.ne.s32.totalorder %s38, %s39
    %p53 = scmp.eq.s32.totalorder %s17, 1
    %p54 = por %p52, %p53
    %p56 = scmp.ne.s32.totalorder %s39, %s55
    %p57 = scmp.eq.s32.totalorder %s17, 0
    %p58 = por %p56, %p57
    %s60 = sadd.s32 %s59, 1
    %p63 = scmp.eq.s32.totalorder %s11, 1
    %p64 = scmp.ne.s32.totalorder %s59, %s61
    %p65 = scmp.eq.s32.totalorder %s11, 0
    %p66 = por %p64, %p65
    %p67 = scmp.ne.s32.totalorder %s59, %s61
    %p68 = scmp.eq.s32.totalorder %s16, 1
    %p69 = por %p67, %p68
    %p70 = scmp.ne.s32.totalorder %s61, %s62
    %p71 = scmp.eq.s32.totalorder %s16, 0
    %p72 = por %p70, %p71
    %p73 = scmp.ne.s32.totalorder %s61, %s62
    %p74 = scmp.eq.s32.totalorder %s17, 1
    %p75 = por %p73, %p74
    %p77 = scmp.ne.s32.totalorder %s62, %s76
    %p78 = scmp.eq.s32.totalorder %s17, 0
    %p79 = por %p77, %p78
    %s81 = sadd.s32 %s80, 1
    %p84 = scmp.eq.s32.totalorder %s11, 1
    %p85 = scmp.ne.s32.totalorder %s80, %s82
    %p86 = scmp.eq.s32.totalorder %s11, 0
    %p87 = por %p85, %p86
    %p88 = scmp.ne.s32.totalorder %s80, %s82
    %p89 = scmp.eq.s32.totalorder %s16, 1
    %p90 = por %p88, %p89
    %p91 = scmp.ne.s32.totalorder %s82, %s83
    %p92 = scmp.eq.s32.totalorder %s16, 0
    %p93 = por %p91, %p92
    %p94 = scmp.ne.s32.totalorder %s82, %s83
    %p95 = scmp.eq.s32.totalorder %s17, 1
    %p96 = por %p94, %p95
    %p98 = scmp.ne.s32.totalorder %s83, %s97
    %p99 = scmp.eq.s32.totalorder %s17, 0
    %p100 = por %p98, %p99
    %s102 = sadd.s32 %s101, 1
    %p105 = scmp.eq.s32.totalorder %s11, 1
    %p106 = scmp.ne.s32.totalorder %s101, %s103
    %p107 = scmp.eq.s32.totalorder %s11, 0
    %p108 = por %p106, %p107
    %p109 = scmp.ne.s32.totalorder %s101, %s103
    %p110 = scmp.eq.s32.totalorder %s16, 1
    %p111 = por %p109, %p110
    %p112 = scmp.ne.s32.totalorder %s103, %s104
    %p113 = scmp.eq.s32.totalorder %s16, 0
    %p114 = por %p112, %p113
    %p115 = scmp.ne.s32.totalorder %s103, %s104
    %p116 = scmp.eq.s32.totalorder %s17, 1
    %p117 = por %p115, %p116
    %p119 = scmp.ne.s32.totalorder %s104, %s118
    %p120 = scmp.eq.s32.totalorder %s17, 0
    %p121 = por %p119, %p120
    %s123 = sadd.s32 %s122, 1
    %p126 = scmp.eq.s32.totalorder %s11, 1
    %p127 = scmp.ne.s32.totalorder %s122, %s124
    %p128 = scmp.eq.s32.totalorder %s11, 0
    %p129 = por %p127, %p128
    %p130 = scmp.ne.s32.totalorder %s122, %s124
    %p131 = scmp.eq.s32.totalorder %s16, 1
    %p132 = por %p130, %p131
    %p133 = scmp.ne.s32.totalorder %s124, %s125
    %p134 = scmp.eq.s32.totalorder %s16, 0
    %p135 = por %p133, %p134
    %p136 = scmp.ne.s32.totalorder %s124, %s125
    %p137 = scmp.eq.s32.totalorder %s17, 1
    %p138 = por %p136, %p137
    %p140 = scmp.ne.s32.totalorder %s125, %s139
    %p141 = scmp.eq.s32.totalorder %s17, 0
    %p142 = por %p140, %p141
    %s143 = ssub.s32 %s18, %s30
    %p144 = scmp.eq.s32.totalorder %s143, 0
    %s146 = sadd.s32 %s145, 1
    %s147 = scalar_select %p144, %s145, %s146
    %p150 = pneg %p144
    %p151 = scmp.eq.s32.totalorder %s11, 1
    %p152 = por %p150, %p151
    %p153 = scmp.ne.s32.totalorder %s145, %s148
    %p154 = scmp.eq.s32.totalorder %s11, 0
    %p155 = por %p153, %p154
    %p156 = scmp.ne.s32.totalorder %s145, %s148
    %p157 = scmp.eq.s32.totalorder %s16, 1
    %p158 = por %p156, %p157
    %p159 = scmp.ne.s32.totalorder %s148, %s149
    %p160 = scmp.eq.s32.totalorder %s16, 0
    %p161 = por %p159, %p160
    %p162 = scmp.ne.s32.totalorder %s148, %s149
    %p163 = scmp.eq.s32.totalorder %s17, 1
    %p164 = por %p162, %p163
    %p166 = scmp.ne.s32.totalorder %s149, %s165
    %p167 = scmp.eq.s32.totalorder %s17, 0
    %p168 = por %p166, %p167
    %p169 = scmp.le.s32.totalorder 1, %s11
    %p170 = scmp.lt.s32.totalorder %s11, 3
    %p171 = pnand %p169, %p170
    %p172 = pneg %p171
    // Predicated region
    $region9: #{tpu_custom_call.1} parent=5 // pred_check
      _
    $region10: #{tpu_custom_call.1} parent=5 // pred_check_branch
      %174 = sbr.rel (%p171) target = $region12
    $region11: #{tpu_custom_call.1} parent=5 // pred_region
      %s175 = ssub.s32 %s11, 1
      // Predicated region
      $region13: #{tpu_custom_call.1} parent=11 // pred_check
        %p176 = pneg %p72
      $region14: #{tpu_custom_call.1} parent=11 // pred_check_branch
        %178 = sbr.rel (%p176) target = $region16
      $region15: #{tpu_custom_call.1} parent=11 // pred_region
        _
      $region16: #{tpu_custom_call.1} parent=11 // pred_fallthru
        _
      // Predicated region
      $region17: #{tpu_custom_call.1} parent=11 // pred_check
        %p179 = pneg %p93
      $region18: #{tpu_custom_call.1} parent=11 // pred_check_branch
        %181 = sbr.rel (%p179) target = $region20
      $region19: #{tpu_custom_call.1} parent=11 // pred_region
        _
      $region20: #{tpu_custom_call.1} parent=11 // pred_fallthru
        _
      // Predicated region
      $region21: #{tpu_custom_call.1} parent=11 // pred_check
        %p182 = pneg %p114
      $region22: #{tpu_custom_call.1} parent=11 // pred_check_branch
        %184 = sbr.rel (%p182) target = $region24
      $region23: #{tpu_custom_call.1} parent=11 // pred_region
        _
      $region24: #{tpu_custom_call.1} parent=11 // pred_fallthru
        _
      // Predicated region
      $region25: #{tpu_custom_call.1} parent=11 // pred_check
        %p185 = pneg %p135
      $region26: #{tpu_custom_call.1} parent=11 // pred_check_branch
        %187 = sbr.rel (%p185) target = $region28
      $region27: #{tpu_custom_call.1} parent=11 // pred_region
        _
      $region28: #{tpu_custom_call.1} parent=11 // pred_fallthru
        _
    $region12: #{tpu_custom_call.1} parent=5 // pred_fallthru
      _
    %p188 = scmp.lt.s32.totalorder %s11, 2
    // Predicated region
    $region29: #{tpu_custom_call.1} parent=5 // pred_check
      %p189 = pneg %p188
    $region30: #{tpu_custom_call.1} parent=5 // pred_check_branch
      %191 = sbr.rel (%p189) target = $region32
    $region31: #{tpu_custom_call.1} parent=5 // pred_region
      // Predicated region
      $region33: #{tpu_custom_call.1} parent=31 // pred_check
        %p192 = pneg %p45
      $region34: #{tpu_custom_call.1} parent=31 // pred_check_branch
        %194 = sbr.rel (%p192) target = $region36
      $region35: #{tpu_custom_call.1} parent=31 // pred_region
        %s195 = smul.u32 2, %s19
        %p196 = scmp.lt.s32.totalorder %s18, 1
        %s197 = scalar_select %p196, %s18, 1
        %p198 = scmp.lt.s32.totalorder %s195, 1
        %s199 = scalar_select %p198, %s195, 1
        %s200 = smul.addr %s197, 2
        %s201 = sadd.s32 %s199, %s200
        %s202 = smul.addr %s201, 4
        %s203 = scalar_lea.vmem %s0, %s202
        %s204 = smul.u32 2, %s19
      $region36: #{tpu_custom_call.1} parent=31 // pred_fallthru
        _
    $region32: #{tpu_custom_call.1} parent=5 // pred_fallthru
      _
    %p205 = scmp.le.s32.totalorder 1, %s11
    %p206 = scmp.lt.s32.totalorder %s11, 3
    %p207 = pnand %p205, %p206
    %p208 = pneg %p207
    // Predicated region
    $region37: #{tpu_custom_call.1} parent=5 // pred_check
      _
    $region38: #{tpu_custom_call.1} parent=5 // pred_check_branch
      %210 = sbr.rel (%p207) target = $region40
    $region39: #{tpu_custom_call.1} parent=5 // pred_region
      %s211 = ssub.s32 %s11, 1
      %s212 = smul.u32 2, %s21
      %p213 = scmp.lt.s32.totalorder %s20, 1
      %s214 = scalar_select %p213, %s20, 1
      %p215 = scmp.lt.s32.totalorder %s212, 1
      %s216 = scalar_select %p215, %s212, 1
      %s217 = smul.addr %s214, 2
      %s218 = sadd.s32 %s216, %s217
      %s219 = smul.addr %s218, 4
      %s220 = scalar_lea.vmem %s0, %s219
      %p221 = pneg %p51
      %p222 = pneg %p48
      %p223 = pneg %p72
      %p224 = pneg %p69
      %p225 = pneg %p93
      %p226 = pneg %p90
      %p227 = pneg %p114
      %p228 = pneg %p111
      %p229 = pneg %p135
      %p230 = pneg %p132
      %p231 = pneg %p161
      %p232 = pneg %p158
      %p233 = scmp.lt.s32.totalorder %s20, 1
      %s234 = scalar_select %p233, %s20, 1
      %s235 = smul.addr %s234, 4
      %s236 = scalar_lea.vmem %s5, %s235
      %s237 = smul.u32 2, %s21
      %p238 = scmp.lt.s32.totalorder %s20, 1
      %s239 = scalar_select %p238, %s20, 1
      %p240 = scmp.lt.s32.totalorder %s237, 1
      %s241 = scalar_select %p240, %s237, 1
      %s242 = smul.addr %s239, 2
      %s243 = sadd.s32 %s241, %s242
      %s244 = smul.addr %s243, 4
      %s245 = scalar_lea.vmem %s0, %s244
      %s246 = smul.u32 2, %s21
      %p247 = scmp.lt.s32.totalorder %s20, 1
      %s248 = scalar_select %p247, %s20, 1
      %s249 = smul.addr %s248, 4
      %s250 = scalar_lea.vmem %s5, %s249
      %p251 = scmp.eq.s32.totalorder %s21, 0
      // Predicated region
      $region41: #{tpu_custom_call.1} parent=39 // pred_check
        %p252 = pneg %p251
      $region42: #{tpu_custom_call.1} parent=39 // pred_check_branch
        %254 = sbr.rel (%p252) target = $region44
      $region43: #{tpu_custom_call.1} parent=39 // pred_region
        %vm255 = vcmask 3072
        %256 = vst.msk [vmem:[#allocation2] sm:$0xf] %vm255, 0.0
      $region44: #{tpu_custom_call.1} parent=39 // pred_fallthru
        _
      %v257 = vld [vmem:[#allocation2] sm:$0xf]
      %v258 = vld [vmem:[%s245] sm:$0xff]
      %v260 = vcombine.high %v258, %v258
      %vm262 = vcmask 1043456
      %v263 = vsel %vm262, %v258, 0.0
      %v264 = vsel %vm262, %v260, 0.0
      %v265 = vadd.f32 %v263, %v264
      %266 = vadd.xlane.f32.xlu0 %v265
      %v267 = vpop.xlane.xlu0 %266
      %v268 = vadd.f32 %v257, %v267
      %vm269 = vcmask 3072
      %270 = vst.msk [vmem:[#allocation2] sm:$0xf] %vm269, %v268
      // Predicated region
      $region45: #{tpu_custom_call.1} parent=39 // pred_check
        %p271 = pneg %p251
      $region46: #{tpu_custom_call.1} parent=39 // pred_check_branch
        %273 = sbr.rel (%p271) target = $region48
      $region47: #{tpu_custom_call.1} parent=39 // pred_region
        %v274 = vld [vmem:[#allocation2] sm:$0xf]
        %v275 = vmul.f32 %v274, 0.00390625
        %v276 = vld [vmem:[%s1] sm:$0xf]
        %278 = vset.pattern.permute.xlu0 0
        %279 = vperm.xlu0 %278, %v275
        %v280 = vpop.permute.xlu0 %279
        %v282 = vmul.f32 %v276, %v280
        %vm283 = vcmask 11264
        %v284 = vsel %vm283, %v282, 0.0
        %v285 = vrot.slane %v284, 4
        %v286 = vadd.f32 %v284, %v285
        %v287 = vrot.slane %v286, 2
        %v288 = vadd.f32 %v286, %v287
        %v289 = vrot.slane %v288, 1
        %v290 = vadd.f32 %v288, %v289
        %v291 = vld [vmem:[%s2] sm:$0x1]
        %v292 = vadd.f32 %v290, %v291
        %v293 = vmax.f32 %v292, 0.0
        %v294 = vld [vmem:[%s3] sm:$0xf]
        %v295 = vlaneseq
        %v296 = vshrl.u32 %v295, 7
        %v297 = vsub.s32 0, %v296
        %v298 = vrot.slane %v293, %v297
        %v299 = vmul.f32 %v294, %v298
        %v300 = vsel %vm283, %v299, 0.0
        %301 = vadd.xlane.f32.xlu0 %v300
        %v302 = vpop.xlane.xlu0 %301
        %v303 = vld [vmem:[%s4] sm:$0xf]
        %v304 = vadd.f32 %v302, %v303
        %v305 = vxor.u32 %v304, 2147483648
        %v306 = vmul.f32 %v305, 1.442695
        %v307 = vpow.pop %v306
        %v308 = vadd.f32 %v307, 1.0
        %v309 = vrcp.pop %v308
        %v310 = vmul.f32 1.0, %v309
        %311 = vst.msk [vmem:[%s250] sm:$0xf] %vm269, %v310
      $region48: #{tpu_custom_call.1} parent=39 // pred_fallthru
        _
      %p312 = scmp.lt.s32.totalorder %s20, 1
      %s313 = scalar_select %p312, %s20, 1
      %s314 = smul.addr %s313, 4
      %s315 = scalar_lea.vmem %s5, %s314
      // Predicated region
      $region49: #{tpu_custom_call.1} parent=39 // pred_check
        %p316 = pneg %p158
      $region50: #{tpu_custom_call.1} parent=39 // pred_check_branch
        %318 = sbr.rel (%p316) target = $region52
      $region51: #{tpu_custom_call.1} parent=39 // pred_region
        _
      $region52: #{tpu_custom_call.1} parent=39 // pred_fallthru
        _
    $region40: #{tpu_custom_call.1} parent=5 // pred_fallthru
      _
    %p319 = scmp.le.s32.totalorder 2, %s11
    // Predicated region
    $region53: #{tpu_custom_call.1} parent=5 // pred_check
      %p320 = pneg %p319
    $region54: #{tpu_custom_call.1} parent=5 // pred_check_branch
      %322 = sbr.rel (%p320) target = $region56
    $region55: #{tpu_custom_call.1} parent=5 // pred_region
      %s323 = ssub.s32 %s11, 2
      // Predicated region
      $region57: #{tpu_custom_call.1} parent=55 // pred_check
        %p324 = pneg %p164
      $region58: #{tpu_custom_call.1} parent=55 // pred_check_branch
        %326 = sbr.rel (%p324) target = $region60
      $region59: #{tpu_custom_call.1} parent=55 // pred_region
        %p327 = scmp.lt.s32.totalorder %s22, 1
        %s328 = scalar_select %p327, %s22, 1
        %s329 = smul.addr %s328, 4
        %s330 = scalar_lea.vmem %s5, %s329
      $region60: #{tpu_custom_call.1} parent=55 // pred_fallthru
        _
    $region56: #{tpu_custom_call.1} parent=5 // pred_fallthru
      _
  $region6: #{tpu_custom_call.1} parent=0 // loop_footer
    %s15 = sadd.s32 1, %s11
  $region7: #{tpu_custom_call.1} parent=0 // loop_footer_branch
    %10 = sbr.rel target = $region3
  $region8: #{tpu_custom_call.1} parent=0 // loop_exit
    _

</llo_original>
